<compile_context>
chip_gen: v7x
topology: tpu7x:2x2x1
jax: 0.10.0
libtpu: 0.0.40
codegen_flags: <defaults>
</compile_context>

<pallas_src>
import functools

import jax
import jax.numpy as jnp
from jax.experimental import pallas as pl
from jax.experimental.pallas import tpu as pltpu

NEG_SLOPE = 0.01   # nn.LeakyReLU() default negative_slope
LANE = 128         # lane (last-dim) padding target for weight output dims
SUBLANE = 8        # sublane (batch-tile) granularity for f32

# Conservative VMEM budgets valid on every generation:
#   v5e/v6e physical 128 MiB (scoped default 16/32 MiB), v7x physical 64 MiB.
_VMEM_WORKING_BUDGET = 40 * 1024 * 1024   # target working set (params + pipeline)
_VMEM_LIMIT_CAP = 48 * 1024 * 1024        # scoped-VMEM request cap (< v7x 64 MiB)
_PARAM_GROUP_BUDGET = 24 * 1024 * 1024    # per-pallas_call resident parameter cap


def _round_up(n, m):
    return ((n + m - 1) // m) * m


def _pad2d(a, rows, cols):
    r, c = a.shape
    if r == rows and c == cols:
        return a
    return jnp.pad(a, ((0, rows - r), (0, cols - c)))


# --------------------------------------------------------------------------
# Kernel
# --------------------------------------------------------------------------
def _mlp_group_kernel(*refs, act_flags):
    """Fused MLP segment on one (TB, K) batch tile.

    refs = (x_ref, w0, b0, w1, b1, ..., o_ref).  Weights/biases are whole
    arrays resident in VMEM (single copy, not pipelined); intermediate
    activations stay as in-kernel values.  act_flags[i] == apply LeakyReLU
    after layer i of this group (always False for the model's final layer).
    """
    x_ref = refs[0]
    o_ref = refs[-1]
    p_refs = refs[1:-1]

    y = x_ref[...]                                    # f32 (TB, K)
    for li, act in enumerate(act_flags):
        w = p_refs[2 * li][...]
        b = p_refs[2 * li + 1][...]                   # (1, Dpad) broadcasts
        y = jnp.dot(y, w, preferred_element_type=jnp.float32) + b
        if act:
            y = jnp.maximum(y, NEG_SLOPE * y)         # LeakyReLU
        # Dropout == identity in eval mode.
    o_ref[...] = y.astype(o_ref.dtype)


# --------------------------------------------------------------------------
# One-time parameter preparation (hoisted out of the per-call path)
# --------------------------------------------------------------------------
def prepare_encoder_params(params, dtype=jnp.float32):
    """Pad weights once: output (lane) dims -> multiples of 128; the first
    layer's K is left unpadded so x never needs a feature-dim pad."""
    prepared = []
    for li, (w, b) in enumerate(params):
        kin, kout = w.shape
        kin_p = kin if li == 0 else _round_up(kin, LANE)
        kout_p = _round_up(kout, LANE)
        w_p = _pad2d(jnp.asarray(w, dtype), kin_p, kout_p)
        b_p = _pad2d(jnp.asarray(b, dtype).reshape(1, -1), 1, kout_p)
        prepared.append((w_p, b_p))
    return {
        "layers": prepared,
        "in_dim": params[0][0].shape[0],
        "out_dim": params[-1][0].shape[1],
    }


def _split_layer_groups(layer_bytes, budget):
    """Greedy split at layer boundaries so each group's params fit `budget`."""
    groups, cur, cur_b = [], [], 0
    for i, nb in enumerate(layer_bytes):
        if cur and cur_b + nb > budget:
            groups.append(cur)
            cur, cur_b = [], 0
        cur.append(i)
        cur_b += nb
        # TODO(synk): a single layer wider than the budget would need K-tiling
        # on an extra "arbitrary" grid axis; not implemented here.
    groups.append(cur)
    return groups


def _choose_batch_tile(batch, lane_dims, resident_param_bytes, tb_max=512):
    """Pick (TB, n_tiles): 2x-buffered x/out tiles + resident params fit the
    VMEM budget, tiles are balanced (no round_up(B, TB) overshoot), and when
    the batch is big enough there are >= 2 grid steps so both v7x TensorCores
    get work (harmless on single-TC v5e/v6e)."""
    max_d = max(lane_dims)
    bytes_per_row = 4 * (2 * lane_dims[0] + 2 * lane_dims[-1] + 3 * max_d)
    avail = max(_VMEM_WORKING_BUDGET - resident_param_bytes, 1 << 20)
    tb_fit = max((avail // bytes_per_row) // SUBLANE * SUBLANE, SUBLANE)
    tb_cap = max(min(tb_max, tb_fit), SUBLANE)
    min_tiles = 2 if batch >= 2 * SUBLANE else 1
    n_tiles = max(pl.cdiv(batch, tb_cap), min_tiles)
    tb = _round_up(pl.cdiv(batch, n_tiles), SUBLANE)
    return tb, n_tiles


# --------------------------------------------------------------------------
# Forward
# --------------------------------------------------------------------------
def encoder_forward(x, prepared, *, tb_max=512):
    """Fused Encoder forward: one pallas_call per layer group (usually one).

    x: [B, input_size] f32.  Returns [B, hidden_layers[-1]].
    """
    layers = prepared["layers"]
    B, Din = x.shape
    assert Din == prepared["in_dim"], (Din, prepared["in_dim"])

    layer_bytes = [w.size * w.dtype.itemsize + b.size * b.dtype.itemsize
                   for (w, b) in layers]
    groups = _split_layer_groups(layer_bytes, _PARAM_GROUP_BUDGET)
    max_group_bytes = max(sum(layer_bytes[i] for i in g) for g in groups)

    lane_dims = [Din] + [w.shape[1] for (w, _) in layers]
    TB, n_tiles = _choose_batch_tile(B, lane_dims, max_group_bytes, tb_max)
    B_pad = n_tiles * TB

    # Per-call work on activations only: pad batch rows with zeros, never K.
    y = _pad2d(x, B_pad, Din)

    last = len(layers) - 1
    # Whole-array VMEM residency => single buffer per parameter (no pipeline).
    param_spec = pl.BlockSpec(memory_space=pltpu.MemorySpace.VMEM)

    for g in groups:
        k_in = y.shape[1]
        d_out = layers[g[-1]][0].shape[1]

        group_params = []
        in_specs = [pl.BlockSpec((TB, k_in), lambda i: (i, 0))]
        for li in g:
            group_params += [layers[li][0], layers[li][1]]
            in_specs += [param_spec, param_spec]
        act_flags = tuple(li != last for li in g)

        # Working-set-derived scoped-VMEM request (>= defaults, <= 48 MiB cap).
        group_bytes = sum(layer_bytes[i] for i in g)
        pipeline_bytes = 4 * TB * (2 * k_in + 2 * d_out + 3 * max(lane_dims))
        vmem_limit = int(min(max(group_bytes + pipeline_bytes + (4 << 20),
                                 32 << 20),
                             _VMEM_LIMIT_CAP))

        y = pl.pallas_call(
            functools.partial(_mlp_group_kernel, act_flags=act_flags),
            out_shape=jax.ShapeDtypeStruct((B_pad, d_out), x.dtype),
            grid=(n_tiles,),
            in_specs=in_specs,
            out_specs=pl.BlockSpec((TB, d_out), lambda i: (i, 0)),
            compiler_params=pltpu.CompilerParams(
                dimension_semantics=("parallel",),
                vmem_limit_bytes=vmem_limit,
            ),
        )(y, *group_params)

    # Callers that can consume the padded (B_pad, Dpad) slab may skip this.
    return y[:B, :prepared["out_dim"]]


# --------------------------------------------------------------------------
# Synthetic params + pure-JAX reference
# --------------------------------------------------------------------------
def init_encoder_params(key, input_size, hidden_layers, dtype=jnp.float32):
    """Deterministic synthetic weights. Returns list of (W[in,out], b[1,out])."""
    dims = [input_size] + list(hidden_layers)
    params = []
    for i in range(len(dims) - 1):
        key, kw, kb = jax.random.split(key, 3)
        bound = 1.0 / jnp.sqrt(dims[i])
        w = jax.random.uniform(kw, (dims[i], dims[i + 1]), dtype, -bound, bound)
        b = jax.random.uniform(kb, (1, dims[i + 1]), dtype, -bound, bound)
        params.append((w, b))
    return params


def encoder_reference(x, params):
    """Pure-JAX reference matching the PyTorch forward (eval mode)."""
    for w, b in params[:-1]:
        x = jax.nn.leaky_relu(x @ w + b, NEG_SLOPE)
    w, b = params[-1]
    return x @ w + b


if __name__ == "__main__":
    key = jax.random.PRNGKey(0)

    batch = 8
    input_size = 64
    hidden_layers = [32, 32, 16]

    kx, kp = jax.random.split(key)
    x = jax.random.normal(kx, (batch, input_size), jnp.float32)
    params = init_encoder_params(kp, input_size, hidden_layers)

    prepared = prepare_encoder_params(params)      # one-time (hoisted) padding
    out = encoder_forward(x, prepared)
    out = jax.block_until_ready(out)

    ref = encoder_reference(x, params)
    assert out.shape == (batch, hidden_layers[-1]), out.shape
    assert jnp.allclose(out, ref, atol=1e-5, rtol=1e-5), "mismatch vs reference"

    print("KERNEL_OK")
</pallas_src>

<mosaic_0001>
module attributes {stable_mosaic.version = 11 : i64} {
  func.func @_mlp_group_kernel(%arg0: i32, %arg1: memref<8x64xf32, #tpu.memory_space<vmem>>, %arg2: memref<64x128xf32, #tpu.memory_space<vmem>>, %arg3: memref<1x128xf32, #tpu.memory_space<vmem>>, %arg4: memref<128x128xf32, #tpu.memory_space<vmem>>, %arg5: memref<1x128xf32, #tpu.memory_space<vmem>>, %arg6: memref<128x128xf32, #tpu.memory_space<vmem>>, %arg7: memref<1x128xf32, #tpu.memory_space<vmem>>, %arg8: memref<8x128xf32, #tpu.memory_space<vmem>>) attributes {dimension_semantics = [#tpu.dimension_semantics<parallel>], iteration_bounds = array<i64: 1>, scalar_prefetch = 0 : i64, scratch_operands = 0 : i64, tpu.core_type = #tpu.core_type<tc>, window_params = [{transform_indices = @transform_0, window_bounds = array<i64: 8, 64>}, {pipeline_mode = #tpu.pipeline_mode<synchronous>, transform_indices = @transform_1, window_bounds = array<i64: 64, 128>}, {pipeline_mode = #tpu.pipeline_mode<synchronous>, transform_indices = @transform_2, window_bounds = array<i64: 1, 128>}, {pipeline_mode = #tpu.pipeline_mode<synchronous>, transform_indices = @transform_3, window_bounds = array<i64: 128, 128>}, {pipeline_mode = #tpu.pipeline_mode<synchronous>, transform_indices = @transform_4, window_bounds = array<i64: 1, 128>}, {pipeline_mode = #tpu.pipeline_mode<synchronous>, transform_indices = @transform_5, window_bounds = array<i64: 128, 128>}, {pipeline_mode = #tpu.pipeline_mode<synchronous>, transform_indices = @transform_6, window_bounds = array<i64: 1, 128>}, {transform_indices = @transform_7, window_bounds = array<i64: 8, 128>}]} {
    %c0 = arith.constant 0 : index
    %c0_0 = arith.constant 0 : index
    %0 = vector.load %arg1[%c0, %c0_0] : memref<8x64xf32, #tpu.memory_space<vmem>>, vector<8x64xf32>
    %c0_1 = arith.constant 0 : index
    %c0_2 = arith.constant 0 : index
    %1 = vector.load %arg2[%c0_1, %c0_2] : memref<64x128xf32, #tpu.memory_space<vmem>>, vector<64x128xf32>
    %c0_3 = arith.constant 0 : index
    %c0_4 = arith.constant 0 : index
    %2 = vector.load %arg3[%c0_3, %c0_4] : memref<1x128xf32, #tpu.memory_space<vmem>>, vector<1x128xf32>
    %cst = arith.constant dense<0.000000e+00> : vector<8x128xf32>
    %3 = tpu.matmul %0, %1, %cst {dimension_numbers = #tpu.dot_dimension_numbers<[1], [0], [0], [1], [0, 0, 1, 1], [], []>} : vector<8x64xf32>, vector<64x128xf32>, vector<8x128xf32> -> vector<8x128xf32>
    %4 = vector.broadcast %2 : vector<1x128xf32> to vector<8x128xf32>
    %5 = arith.addf %3, %4 : vector<8x128xf32>
    %cst_5 = arith.constant 0.00999999977 : f32
    %6 = vector.broadcast %cst_5 : f32 to vector<8x128xf32>
    %7 = arith.mulf %6, %5 : vector<8x128xf32>
    %8 = arith.maximumf %5, %7 : vector<8x128xf32>
    %c0_6 = arith.constant 0 : index
    %c0_7 = arith.constant 0 : index
    %9 = vector.load %arg4[%c0_6, %c0_7] : memref<128x128xf32, #tpu.memory_space<vmem>>, vector<128x128xf32>
    %c0_8 = arith.constant 0 : index
    %c0_9 = arith.constant 0 : index
    %10 = vector.load %arg5[%c0_8, %c0_9] : memref<1x128xf32, #tpu.memory_space<vmem>>, vector<1x128xf32>
    %cst_10 = arith.constant dense<0.000000e+00> : vector<8x128xf32>
    %11 = tpu.matmul %8, %9, %cst_10 {dimension_numbers = #tpu.dot_dimension_numbers<[1], [0], [0], [1], [0, 0, 1, 1], [], []>} : vector<8x128xf32>, vector<128x128xf32>, vector<8x128xf32> -> vector<8x128xf32>
    %12 = vector.broadcast %10 : vector<1x128xf32> to vector<8x128xf32>
    %13 = arith.addf %11, %12 : vector<8x128xf32>
    %cst_11 = arith.constant 0.00999999977 : f32
    %14 = vector.broadcast %cst_11 : f32 to vector<8x128xf32>
    %15 = arith.mulf %14, %13 : vector<8x128xf32>
    %16 = arith.maximumf %13, %15 : vector<8x128xf32>
    %c0_12 = arith.constant 0 : index
    %c0_13 = arith.constant 0 : index
    %17 = vector.load %arg6[%c0_12, %c0_13] : memref<128x128xf32, #tpu.memory_space<vmem>>, vector<128x128xf32>
    %c0_14 = arith.constant 0 : index
    %c0_15 = arith.constant 0 : index
    %18 = vector.load %arg7[%c0_14, %c0_15] : memref<1x128xf32, #tpu.memory_space<vmem>>, vector<1x128xf32>
    %cst_16 = arith.constant dense<0.000000e+00> : vector<8x128xf32>
    %19 = tpu.matmul %16, %17, %cst_16 {dimension_numbers = #tpu.dot_dimension_numbers<[1], [0], [0], [1], [0, 0, 1, 1], [], []>} : vector<8x128xf32>, vector<128x128xf32>, vector<8x128xf32> -> vector<8x128xf32>
    %20 = vector.broadcast %18 : vector<1x128xf32> to vector<8x128xf32>
    %21 = arith.addf %19, %20 : vector<8x128xf32>
    %c0_17 = arith.constant 0 : index
    %c0_18 = arith.constant 0 : index
    %22 = vector.load %arg8[%c0_17, %c0_18] : memref<8x128xf32, #tpu.memory_space<vmem>>, vector<8x128xf32>
    tpu.vector_store %arg8[%c0_17, %c0_18], %21 {strides = array<i32>} : memref<8x128xf32, #tpu.memory_space<vmem>>, vector<8x128xf32>,
    return
  }
  func.func @transform_0(%arg0: i32) -> (i32, i32) {
    %c0_i32 = arith.constant 0 : i32
    %c0_i32_0 = arith.constant 0 : i32
    return %arg0, %c0_i32 : i32, i32
  }
  func.func @transform_1(%arg0: i32) -> (i32, i32) {
    %c0_i32 = arith.constant 0 : i32
    %c0_i32_0 = arith.constant 0 : i32
    %c0_i32_1 = arith.constant 0 : i32
    return %c0_i32, %c0_i32_0 : i32, i32
  }
  func.func @transform_2(%arg0: i32) -> (i32, i32) {
    %c0_i32 = arith.constant 0 : i32
    %c0_i32_0 = arith.constant 0 : i32
    %c0_i32_1 = arith.constant 0 : i32
    return %c0_i32, %c0_i32_0 : i32, i32
  }
  func.func @transform_3(%arg0: i32) -> (i32, i32) {
    %c0_i32 = arith.constant 0 : i32
    %c0_i32_0 = arith.constant 0 : i32
    %c0_i32_1 = arith.constant 0 : i32
    return %c0_i32, %c0_i32_0 : i32, i32
  }
  func.func @transform_4(%arg0: i32) -> (i32, i32) {
    %c0_i32 = arith.constant 0 : i32
    %c0_i32_0 = arith.constant 0 : i32
    %c0_i32_1 = arith.constant 0 : i32
    return %c0_i32, %c0_i32_0 : i32, i32
  }
  func.func @transform_5(%arg0: i32) -> (i32, i32) {
    %c0_i32 = arith.constant 0 : i32
    %c0_i32_0 = arith.constant 0 : i32
    %c0_i32_1 = arith.constant 0 : i32
    return %c0_i32, %c0_i32_0 : i32, i32
  }
  func.func @transform_6(%arg0: i32) -> (i32, i32) {
    %c0_i32 = arith.constant 0 : i32
    %c0_i32_0 = arith.constant 0 : i32
    %c0_i32_1 = arith.constant 0 : i32
    return %c0_i32, %c0_i32_0 : i32, i32
  }
  func.func @transform_7(%arg0: i32) -> (i32, i32) {
    %c0_i32 = arith.constant 0 : i32
    %c0_i32_0 = arith.constant 0 : i32
    return %arg0, %c0_i32 : i32, i32
  }
}

</mosaic_0001>

<llo_original>
// kernel: tpu_custom_call.1
$region0: #{tpu_custom_call.1}
  #allocation0 [shape = 'u32[]', space=smem, size = 0x4, offset = 0x4, fixed_abs, tag = 'smem constant byte address 0x4 - core index']
  #allocation1 [shape = 'u32[144,128]{1,0:T(1,128)}', space=vmem, size = 0x12000, scoped, tag = 'internal scratch']
  %s0 = inlined_call_operand.hbm [shape: f32[8,64], index: 0, kind: input, shape index: {}]
  %s1 = inlined_call_operand.hbm [shape: f32[64,128], index: 1, kind: input, shape index: {}]
  %s2 = inlined_call_operand.vmem [shape: f32[1,128], index: 2, kind: input, shape index: {}]
  %s3 = inlined_call_operand.hbm [shape: f32[128,128], index: 3, kind: input, shape index: {}]
  %s4 = inlined_call_operand.vmem [shape: f32[1,128], index: 4, kind: input, shape index: {}]
  %s5 = inlined_call_operand.hbm [shape: f32[128,128], index: 5, kind: input, shape index: {}]
  %s6 = inlined_call_operand.vmem [shape: f32[1,128], index: 6, kind: input, shape index: {}]
  %s7 = inlined_call_operand.hbm [shape: f32[8,128], index: 7, kind: output, shape index: {}]
  %s8 = sld [smem:[#allocation0]]
  $region54: #{tpu_custom_call.1} parent=0
    _
  %s10 = ssub.s32 1, %s8
  %s11 = scalar_select 0, %s10, %s8
  $region1: #{tpu_custom_call.1} parent=0
    #allocation2 [shape = 'u8[4096]{0}', space=vmem, size = 0x1000, scoped, tag = 'input window, operand 0, single buffered']
    #allocation3 [shape = 's32[1]{0}', space=sflag, size = 0x4, scoped, tag = 'scoped memory for tpu_custom_call.1']
    #allocation4 [shape = 's32[1]{0}', space=sflag, size = 0x4, scoped, tag = 'scoped memory for tpu_custom_call.1']
    #allocation5 [shape = 'u8[32768]{0}', space=vmem, size = 0x8000, scoped, tag = 'input window, operand 1, single buffered']
    #allocation6 [shape = 's32[1]{0}', space=sflag, size = 0x4, scoped, tag = 'scoped memory for tpu_custom_call.1']
    #allocation7 [shape = 'u8[65536]{0}', space=vmem, size = 0x10000, scoped, tag = 'input window, operand 3, single buffered']
    #allocation8 [shape = 'u8[65536]{0}', space=vmem, size = 0x10000, scoped, tag = 'input window, operand 5, single buffered']
    #allocation9 [shape = 's32[1]{0}', space=sflag, size = 0x4, scoped, tag = 'scoped memory for tpu_custom_call.1']
    #allocation10 [shape = 'u8[4096]{0}', space=vmem, size = 0x1000, scoped, tag = 'output window, operand 0, single buffered']
    %12 = vsyncpa [#allocation3], 0
    %13 = vsyncpa [#allocation6], 0
    %14 = vsyncpa [#allocation9], 0
    %15 = vsyncpa [#allocation4], 0
    // Predicated region
    $region2: #{tpu_custom_call.1} parent=1 // pred_check
      _
    $region3: #{tpu_custom_call.1} parent=1 // pred_check_branch
      %17 = sbr.rel (0) target = $region5
    $region4: #{tpu_custom_call.1} parent=1 // pred_region
      %s19 = ssub.s32 128, 128
      %20 = vsyncadd [#allocation3], %s19
      %s22 = sshll.u32 [#allocation2], 4
      %s23 = int_to_ptr.vmem [resolvable:$true] %s22
      %25 = dma.hbm_to_vmem [thread:$0]  %s0, 128, %s23, [#allocation3]
    $region5: #{tpu_custom_call.1} parent=1 // pred_fallthru
      _
    // Predicated region
    $region6: #{tpu_custom_call.1} parent=1 // pred_check
      _
    $region7: #{tpu_custom_call.1} parent=1 // pred_check_branch
      %27 = sbr.rel (0) target = $region9
    $region8: #{tpu_custom_call.1} parent=1 // pred_region
      %s29 = ssub.s32 1024, 1024
      %30 = vsyncadd [#allocation6], %s29
      %s31 = sshll.u32 [#allocation5], 4
      %s32 = int_to_ptr.vmem [resolvable:$true] %s31
      %37 = dma.hbm_to_vmem [thread:$0]  %s1, 1024, %s32, [#allocation6], 128, 128, 8
    $region9: #{tpu_custom_call.1} parent=1 // pred_fallthru
      _
    // Predicated region
    $region10: #{tpu_custom_call.1} parent=1 // pred_check
      _
    $region11: #{tpu_custom_call.1} parent=1 // pred_check_branch
      %39 = sbr.rel (0) target = $region13
    $region12: #{tpu_custom_call.1} parent=1 // pred_region
      _
    $region13: #{tpu_custom_call.1} parent=1 // pred_fallthru
      _
    // Predicated region
    $region14: #{tpu_custom_call.1} parent=1 // pred_check
      _
    $region15: #{tpu_custom_call.1} parent=1 // pred_check_branch
      %41 = sbr.rel (0) target = $region17
    $region16: #{tpu_custom_call.1} parent=1 // pred_region
      %s43 = ssub.s32 2048, 2048
      %44 = vsyncadd [#allocation6], %s43
      %s45 = sshll.u32 [#allocation7], 4
      %s46 = int_to_ptr.vmem [resolvable:$true] %s45
      %51 = dma.hbm_to_vmem [thread:$0]  %s3, 2048, %s46, [#allocation6], 128, 128, 8
    $region17: #{tpu_custom_call.1} parent=1 // pred_fallthru
      _
    // Predicated region
    $region18: #{tpu_custom_call.1} parent=1 // pred_check
      _
    $region19: #{tpu_custom_call.1} parent=1 // pred_check_branch
      %53 = sbr.rel (0) target = $region21
    $region20: #{tpu_custom_call.1} parent=1 // pred_region
      _
    $region21: #{tpu_custom_call.1} parent=1 // pred_fallthru
      _
    // Predicated region
    $region22: #{tpu_custom_call.1} parent=1 // pred_check
      _
    $region23: #{tpu_custom_call.1} parent=1 // pred_check_branch
      %55 = sbr.rel (0) target = $region25
    $region24: #{tpu_custom_call.1} parent=1 // pred_region
      %s57 = ssub.s32 2048, 2048
      %58 = vsyncadd [#allocation9], %s57
      %s59 = sshll.u32 [#allocation8], 4
      %s60 = int_to_ptr.vmem [resolvable:$true] %s59
      %65 = dma.hbm_to_vmem [thread:$0]  %s5, 2048, %s60, [#allocation9], 128, 128, 8
    $region25: #{tpu_custom_call.1} parent=1 // pred_fallthru
      _
    // Predicated region
    $region26: #{tpu_custom_call.1} parent=1 // pred_check
      _
    $region27: #{tpu_custom_call.1} parent=1 // pred_check_branch
      %67 = sbr.rel (0) target = $region29
    $region28: #{tpu_custom_call.1} parent=1 // pred_region
      _
    $region29: #{tpu_custom_call.1} parent=1 // pred_fallthru
      _
    // Predicated region
    $region30: #{tpu_custom_call.1} parent=1 // pred_check
      _
    $region31: #{tpu_custom_call.1} parent=1 // pred_check_branch
      %69 = sbr.rel (0) target = $region33
    $region32: #{tpu_custom_call.1} parent=1 // pred_region
      %70 = dma.done [#allocation3], 128
    $region33: #{tpu_custom_call.1} parent=1 // pred_fallthru
      _
    // Predicated region
    $region34: #{tpu_custom_call.1} parent=1 // pred_check
      _
    $region35: #{tpu_custom_call.1} parent=1 // pred_check_branch
      %72 = sbr.rel (0) target = $region37
    $region36: #{tpu_custom_call.1} parent=1 // pred_region
      %73 = dma.done [#allocation6], 1024
    $region37: #{tpu_custom_call.1} parent=1 // pred_fallthru
      _
    // Predicated region
    $region38: #{tpu_custom_call.1} parent=1 // pred_check
      _
    $region39: #{tpu_custom_call.1} parent=1 // pred_check_branch
      %75 = sbr.rel (0) target = $region41
    $region40: #{tpu_custom_call.1} parent=1 // pred_region
      %76 = dma.done [#allocation6], 2048
    $region41: #{tpu_custom_call.1} parent=1 // pred_fallthru
      _
    // Predicated region
    $region42: #{tpu_custom_call.1} parent=1 // pred_check
      _
    $region43: #{tpu_custom_call.1} parent=1 // pred_check_branch
      %78 = sbr.rel (0) target = $region45
    $region44: #{tpu_custom_call.1} parent=1 // pred_region
      %79 = dma.done [#allocation9], 2048
    $region45: #{tpu_custom_call.1} parent=1 // pred_fallthru
      _
    %v80 = vld [vmem:[#allocation2] sm:$0xff]
    %v81 = vld [vmem:[#allocation5] sm:$0xff]
    %v82 = vld [vmem:[#allocation5 + $0x8] sm:$0xff]
    %v83 = vld [vmem:[#allocation5 + $0x10] sm:$0xff]
    %v84 = vld [vmem:[#allocation5 + $0x18] sm:$0xff]
    %v85 = vld [vmem:[#allocation5 + $0x20] sm:$0xff]
    %v86 = vld [vmem:[#allocation5 + $0x28] sm:$0xff]
    %v87 = vld [vmem:[#allocation5 + $0x30] sm:$0xff]
    %v88 = vld [vmem:[#allocation5 + $0x38] sm:$0xff]
    %v89 = vld [vmem:[%s2] sm:$0x1]
    %v91 = vlaneseq
    %v92 = vshrl.u32 %v91, 7
    %v93 = vsub.s32 0, %v92
    %v94 = vrot.slane %v89, %v93
    %vm96 = vcmask 523264
    %v98 = vsel %vm96, %v80, 0
    %100 = vmatprep.subr.mxu0 0.0
    %101 = vmatpush1.msra.mxu0 %v81
    %102 = vmatprep.subr.mxu0 0.0
    %103 = vmatpush1.msra.mxu0 %v82
    %104 = vmatprep.subr.mxu0 0.0
    %105 = vmatpush1.msra.mxu0 %v83
    %106 = vmatprep.subr.mxu0 0.0
    %107 = vmatpush1.msra.mxu0 %v84
    %108 = vmatprep.subr.mxu0 0.0
    %109 = vmatpush1.msra.mxu0 %v85
    %110 = vmatprep.subr.mxu0 0.0
    %111 = vmatpush1.msra.mxu0 %v86
    %112 = vmatprep.subr.mxu0 0.0
    %113 = vmatpush1.msra.mxu0 %v87
    %114 = vmatprep.subr.mxu0 0.0
    %115 = vmatpush1.msra.mxu0 %v88
    %116 = vmatprep.subr.mxu0 0.0
    %117 = vmatpush1.msra.mxu0 0.0
    %118 = vmatprep.subr.mxu0 0.0
    %119 = vmatpush1.msra.mxu0 0.0
    %120 = vmatprep.subr.mxu0 0.0
    %121 = vmatpush1.msra.mxu0 0.0
    %122 = vmatprep.subr.mxu0 0.0
    %123 = vmatpush1.msra.mxu0 0.0
    %124 = vmatprep.subr.mxu0 0.0
    %125 = vmatpush1.msra.mxu0 0.0
    %126 = vmatprep.subr.mxu0 0.0
    %127 = vmatpush1.msra.mxu0 0.0
    %128 = vmatprep.subr.mxu0 0.0
    %129 = vmatpush1.msra.mxu0 0.0
    %130 = vmatprep.subr.mxu0 0.0
    %131 = vmatpush1.msra.mxu0 0.0
    %132 = vmatprep.subr.mxu0 0.0
    %133 = vmatpush1.msra.mxu0 0.0
    %134 = vmatprep.subr.mxu0 0.0
    %135 = vmatpush1.msra.mxu0 0.0
    %136 = vmatprep.subr.mxu0 0.0
    %137 = vmatpush1.msra.mxu0 0.0
    %138 = vmatprep.subr.mxu0 0.0
    %139 = vmatpush1.msra.mxu0 0.0
    %140 = vmatprep.subr.mxu0 0.0
    %141 = vmatpush1.msra.mxu0 0.0
    %142 = vmatprep.subr.mxu0 0.0
    %143 = vmatpush1.msra.mxu0 0.0
    %144 = vmatprep.subr.mxu0 0.0
    %145 = vmatpush1.msra.mxu0 0.0
    %146 = vmatprep.subr.mxu0 0.0
    %147 = vmatpush1.msra.mxu0 0.0
    %148 = vmatprep.subr.mxu0 0.0
    %149 = vmatpush1.msra.mxu0 0.0
    %150 = vmatprep.subr.mxu0 0.0
    %151 = vmatpush1.msra.mxu0 0.0
    %152 = vmatprep.subr.mxu0 0.0
    %153 = vmatpush1.msra.mxu0 0.0
    %154 = vmatprep.subr.mxu0 0.0
    %155 = vmatpush1.msra.mxu0 0.0
    %156 = vmatprep.subr.mxu0 0.0
    %157 = vmatpush1.msra.mxu0 0.0
    %158 = vmatprep.subr.mxu0 0.0
    %159 = vmatpush1.msra.mxu0 0.0
    %160 = vmatprep.subr.mxu0 0.0
    %161 = vmatpush1.msra.mxu0 0.0
    %162 = vmatprep.subr.mxu0 0.0
    %163 = vmatpush1.msra.mxu0 0.0
    %164 = vmatprep.mubr.f32.mxu0 0.0
    %165 = vmatmul.mubr.f32.gmra.mrb[0].mxu0 %v98
    %v166 = vpop.f32.mrb[0].mxu0
    %v167 = vadd.f32 %v94, %v166
    %v168 = vpop.f32.mrb[0].mxu0
    %169 = vdwg.mxu0
    %v170 = vmul.f32 %v167, 0.01
    %v171 = vmax.f32 %v167, %v170
    %v172 = vld [vmem:[#allocation7] sm:$0xff]
    %v173 = vld [vmem:[#allocation7 + $0x8] sm:$0xff]
    %v174 = vld [vmem:[#allocation7 + $0x10] sm:$0xff]
    %v175 = vld [vmem:[#allocation7 + $0x18] sm:$0xff]
    %v176 = vld [vmem:[#allocation7 + $0x20] sm:$0xff]
    %v177 = vld [vmem:[#allocation7 + $0x28] sm:$0xff]
    %v178 = vld [vmem:[#allocation7 + $0x30] sm:$0xff]
    %v179 = vld [vmem:[#allocation7 + $0x38] sm:$0xff]
    %v180 = vld [vmem:[#allocation7 + $0x40] sm:$0xff]
    %v181 = vld [vmem:[#allocation7 + $0x48] sm:$0xff]
    %v182 = vld [vmem:[#allocation7 + $0x50] sm:$0xff]
    %v183 = vld [vmem:[#allocation7 + $0x58] sm:$0xff]
    %v184 = vld [vmem:[#allocation7 + $0x60] sm:$0xff]
    %v185 = vld [vmem:[#allocation7 + $0x68] sm:$0xff]
    %v186 = vld [vmem:[#allocation7 + $0x70] sm:$0xff]
    %v187 = vld [vmem:[#allocation7 + $0x78] sm:$0xff]
    %v188 = vld [vmem:[%s4] sm:$0x1]
    %v190 = vlaneseq
    %v191 = vshrl.u32 %v190, 7
    %v192 = vsub.s32 0, %v191
    %v193 = vrot.slane %v188, %v192
    %195 = vmatprep.subr.mxu0 0.0
    %196 = vmatpush1.msra.mxu0 %v172
    %197 = vmatprep.subr.mxu0 0.0
    %198 = vmatpush1.msra.mxu0 %v173
    %199 = vmatprep.subr.mxu0 0.0
    %200 = vmatpush1.msra.mxu0 %v174
    %201 = vmatprep.subr.mxu0 0.0
    %202 = vmatpush1.msra.mxu0 %v175
    %203 = vmatprep.subr.mxu0 0.0
    %204 = vmatpush1.msra.mxu0 %v176
    %205 = vmatprep.subr.mxu0 0.0
    %206 = vmatpush1.msra.mxu0 %v177
    %207 = vmatprep.subr.mxu0 0.0
    %208 = vmatpush1.msra.mxu0 %v178
    %209 = vmatprep.subr.mxu0 0.0
    %210 = vmatpush1.msra.mxu0 %v179
    %211 = vmatprep.subr.mxu0 0.0
    %212 = vmatpush1.msra.mxu0 %v180
    %213 = vmatprep.subr.mxu0 0.0
    %214 = vmatpush1.msra.mxu0 %v181
    %215 = vmatprep.subr.mxu0 0.0
    %216 = vmatpush1.msra.mxu0 %v182
    %217 = vmatprep.subr.mxu0 0.0
    %218 = vmatpush1.msra.mxu0 %v183
    %219 = vmatprep.subr.mxu0 0.0
    %220 = vmatpush1.msra.mxu0 %v184
    %221 = vmatprep.subr.mxu0 0.0
    %222 = vmatpush1.msra.mxu0 %v185
    %223 = vmatprep.subr.mxu0 0.0
    %224 = vmatpush1.msra.mxu0 %v186
    %225 = vmatprep.subr.mxu0 0.0
    %226 = vmatpush1.msra.mxu0 %v187
    %227 = vmatprep.subr.mxu0 0.0
    %228 = vmatpush1.msra.mxu0 0.0
    %229 = vmatprep.subr.mxu0 0.0
    %230 = vmatpush1.msra.mxu0 0.0
    %231 = vmatprep.subr.mxu0 0.0
    %232 = vmatpush1.msra.mxu0 0.0
    %233 = vmatprep.subr.mxu0 0.0
    %234 = vmatpush1.msra.mxu0 0.0
    %235 = vmatprep.subr.mxu0 0.0
    %236 = vmatpush1.msra.mxu0 0.0
    %237 = vmatprep.subr.mxu0 0.0
    %238 = vmatpush1.msra.mxu0 0.0
    %239 = vmatprep.subr.mxu0 0.0
    %240 = vmatpush1.msra.mxu0 0.0
    %241 = vmatprep.subr.mxu0 0.0
    %242 = vmatpush1.msra.mxu0 0.0
    %243 = vmatprep.subr.mxu0 0.0
    %244 = vmatpush1.msra.mxu0 0.0
    %245 = vmatprep.subr.mxu0 0.0
    %246 = vmatpush1.msra.mxu0 0.0
    %247 = vmatprep.subr.mxu0 0.0
    %248 = vmatpush1.msra.mxu0 0.0
    %249 = vmatprep.subr.mxu0 0.0
    %250 = vmatpush1.msra.mxu0 0.0
    %251 = vmatprep.subr.mxu0 0.0
    %252 = vmatpush1.msra.mxu0 0.0
    %253 = vmatprep.subr.mxu0 0.0
    %254 = vmatpush1.msra.mxu0 0.0
    %255 = vmatprep.subr.mxu0 0.0
    %256 = vmatpush1.msra.mxu0 0.0
    %257 = vmatprep.subr.mxu0 0.0
    %258 = vmatpush1.msra.mxu0 0.0
    %259 = vmatprep.mubr.f32.mxu0 0.0
    %260 = vmatmul.mubr.f32.gmra.mrb[0].mxu0 %v171
    %v261 = vpop.f32.mrb[0].mxu0
    %v262 = vadd.f32 %v193, %v261
    %v263 = vpop.f32.mrb[0].mxu0
    %264 = vdwg.mxu0
    %v265 = vmul.f32 %v262, 0.01
    %v266 = vmax.f32 %v262, %v265
    %v267 = vld [vmem:[#allocation8] sm:$0xff]
    %v268 = vld [vmem:[#allocation8 + $0x8] sm:$0xff]
    %v269 = vld [vmem:[#allocation8 + $0x10] sm:$0xff]
    %v270 = vld [vmem:[#allocation8 + $0x18] sm:$0xff]
    %v271 = vld [vmem:[#allocation8 + $0x20] sm:$0xff]
    %v272 = vld [vmem:[#allocation8 + $0x28] sm:$0xff]
    %v273 = vld [vmem:[#allocation8 + $0x30] sm:$0xff]
    %v274 = vld [vmem:[#allocation8 + $0x38] sm:$0xff]
    %v275 = vld [vmem:[#allocation8 + $0x40] sm:$0xff]
    %v276 = vld [vmem:[#allocation8 + $0x48] sm:$0xff]
    %v277 = vld [vmem:[#allocation8 + $0x50] sm:$0xff]
    %v278 = vld [vmem:[#allocation8 + $0x58] sm:$0xff]
    %v279 = vld [vmem:[#allocation8 + $0x60] sm:$0xff]
    %v280 = vld [vmem:[#allocation8 + $0x68] sm:$0xff]
    %v281 = vld [vmem:[#allocation8 + $0x70] sm:$0xff]
    %v282 = vld [vmem:[#allocation8 + $0x78] sm:$0xff]
    %v283 = vld [vmem:[%s6] sm:$0x1]
    %v285 = vlaneseq
    %v286 = vshrl.u32 %v285, 7
    %v287 = vsub.s32 0, %v286
    %v288 = vrot.slane %v283, %v287
    %290 = vmatprep.subr.mxu0 0.0
    %291 = vmatpush1.msra.mxu0 %v267
    %292 = vmatprep.subr.mxu0 0.0
    %293 = vmatpush1.msra.mxu0 %v268
    %294 = vmatprep.subr.mxu0 0.0
    %295 = vmatpush1.msra.mxu0 %v269
    %296 = vmatprep.subr.mxu0 0.0
    %297 = vmatpush1.msra.mxu0 %v270
    %298 = vmatprep.subr.mxu0 0.0
    %299 = vmatpush1.msra.mxu0 %v271
    %300 = vmatprep.subr.mxu0 0.0
    %301 = vmatpush1.msra.mxu0 %v272
    %302 = vmatprep.subr.mxu0 0.0
    %303 = vmatpush1.msra.mxu0 %v273
    %304 = vmatprep.subr.mxu0 0.0
    %305 = vmatpush1.msra.mxu0 %v274
    %306 = vmatprep.subr.mxu0 0.0
    %307 = vmatpush1.msra.mxu0 %v275
    %308 = vmatprep.subr.mxu0 0.0
    %309 = vmatpush1.msra.mxu0 %v276
    %310 = vmatprep.subr.mxu0 0.0
    %311 = vmatpush1.msra.mxu0 %v277
    %312 = vmatprep.subr.mxu0 0.0
    %313 = vmatpush1.msra.mxu0 %v278
    %314 = vmatprep.subr.mxu0 0.0
    %315 = vmatpush1.msra.mxu0 %v279
    %316 = vmatprep.subr.mxu0 0.0
    %317 = vmatpush1.msra.mxu0 %v280
    %318 = vmatprep.subr.mxu0 0.0
    %319 = vmatpush1.msra.mxu0 %v281
    %320 = vmatprep.subr.mxu0 0.0
    %321 = vmatpush1.msra.mxu0 %v282
    %322 = vmatprep.subr.mxu0 0.0
    %323 = vmatpush1.msra.mxu0 0.0
    %324 = vmatprep.subr.mxu0 0.0
    %325 = vmatpush1.msra.mxu0 0.0
    %326 = vmatprep.subr.mxu0 0.0
    %327 = vmatpush1.msra.mxu0 0.0
    %328 = vmatprep.subr.mxu0 0.0
    %329 = vmatpush1.msra.mxu0 0.0
    %330 = vmatprep.subr.mxu0 0.0
    %331 = vmatpush1.msra.mxu0 0.0
    %332 = vmatprep.subr.mxu0 0.0
    %333 = vmatpush1.msra.mxu0 0.0
    %334 = vmatprep.subr.mxu0 0.0
    %335 = vmatpush1.msra.mxu0 0.0
    %336 = vmatprep.subr.mxu0 0.0
    %337 = vmatpush1.msra.mxu0 0.0
    %338 = vmatprep.subr.mxu0 0.0
    %339 = vmatpush1.msra.mxu0 0.0
    %340 = vmatprep.subr.mxu0 0.0
    %341 = vmatpush1.msra.mxu0 0.0
    %342 = vmatprep.subr.mxu0 0.0
    %343 = vmatpush1.msra.mxu0 0.0
    %344 = vmatprep.subr.mxu0 0.0
    %345 = vmatpush1.msra.mxu0 0.0
    %346 = vmatprep.subr.mxu0 0.0
    %347 = vmatpush1.msra.mxu0 0.0
    %348 = vmatprep.subr.mxu0 0.0
    %349 = vmatpush1.msra.mxu0 0.0
    %350 = vmatprep.subr.mxu0 0.0
    %351 = vmatpush1.msra.mxu0 0.0
    %352 = vmatprep.subr.mxu0 0.0
    %353 = vmatpush1.msra.mxu0 0.0
    %354 = vmatprep.mubr.f32.mxu0 0.0
    %355 = vmatmul.mubr.f32.gmra.mrb[0].mxu0 %v266
    %v356 = vpop.f32.mrb[0].mxu0
    %v357 = vadd.f32 %v288, %v356
    %v358 = vpop.f32.mrb[0].mxu0
    %359 = vdwg.mxu0
    %360 = vst [vmem:[#allocation10] sm:$0xff] %v357
    // Predicated region
    $region46: #{tpu_custom_call.1} parent=1 // pred_check
      _
    $region47: #{tpu_custom_call.1} parent=1 // pred_check_branch
      %362 = sbr.rel (0) target = $region49
    $region48: #{tpu_custom_call.1} parent=1 // pred_region
      %s364 = ssub.s32 128, 128
      %365 = vsyncadd [#allocation4], %s364
      %s367 = sshll.u32 [#allocation10], 4
      %s368 = int_to_ptr.vmem [resolvable:$true] %s367
      %370 = dma.vmem_to_hbm [thread:$0]  %s368, 128, %s7, [#allocation4]
    $region49: #{tpu_custom_call.1} parent=1 // pred_fallthru
      _
    // Predicated region
    $region50: #{tpu_custom_call.1} parent=1 // pred_check
      _
    $region51: #{tpu_custom_call.1} parent=1 // pred_check_branch
      %372 = sbr.rel (0) target = $region53
    $region52: #{tpu_custom_call.1} parent=1 // pred_region
      %373 = dma.done [#allocation4], 128
    $region53: #{tpu_custom_call.1} parent=1 // pred_fallthru
      _
    %374 = vsyncpa [#allocation3], 1
    %375 = vsyncpa [#allocation6], 1
    %376 = vsyncpa [#allocation9], 1
    %377 = vsyncpa [#allocation4], 1

</llo_original>
